<compile_context>
chip_gen: v6e
topology: v6e:2x2x1
jax: 0.10.0
libtpu: 0.0.40
codegen_flags: <defaults>
</compile_context>

<pallas_src>
import functools

import jax
import jax.numpy as jnp
from jax import lax
from jax.experimental import pallas as pl
from jax.experimental.pallas import tpu as pltpu


# ---------------------------------------------------------------------------
# Kernels
# ---------------------------------------------------------------------------

def _adain_row_kernel(content_ref, style_ref, out_ref, *, eps, n_content, n_style):
    """Fast path: one block holds the full spatial extent of tile_rows rows."""
    x = content_ref[...].astype(jnp.float32)      # (tile_rows, Hc*Wc)
    s = style_ref[...].astype(jnp.float32)        # (tile_rows, Hs*Ws)

    # Exact two-pass content moments (biased variance, as batch_norm training).
    c_mean = jnp.sum(x, axis=-1, keepdims=True) * (1.0 / n_content)
    xc = x - c_mean
    c_var = jnp.sum(xc * xc, axis=-1, keepdims=True) * (1.0 / n_content)

    # Exact two-pass style moments (unbiased std, torch.Tensor.std default).
    s_mean = jnp.sum(s, axis=-1, keepdims=True) * (1.0 / n_style)
    sc = s - s_mean
    s_var = jnp.sum(sc * sc, axis=-1, keepdims=True) * (1.0 / (n_style - 1.0))

    # out = s_std * (x - c_mean) / sqrt(c_var + eps) + s_mean
    scale = jnp.sqrt(s_var) * lax.rsqrt(c_var + eps)   # rsqrt on the EUP
    out_ref[...] = (scale * xc + s_mean).astype(out_ref.dtype)


def _adain_tiled_kernel(content_ref, style_ref, out_ref,
                        sum_ref, sumsq_ref, pivot_ref, scale_ref, shift_ref,
                        *, eps, n_content, n_style, nsb):
    """Large-H*W path: spatial axis tiled; two sweeps over the spatial axis.

    Grid axis 1 has extent 2*nsb.  Steps [0, nsb) accumulate pivot-shifted
    sum / sum-of-squares; step nsb derives the per-row affine (using the
    resident style row); steps [nsb, 2*nsb) apply the affine and stream the
    output blocks (output block index is held at 0 during the first sweep, so
    nothing stale is ever flushed).
    """
    j = pl.program_id(1)

    @pl.when(j == 0)
    def _():
        x0 = content_ref[...].astype(jnp.float32)
        # Pivot near the mean -> mean-shifted moments stay well conditioned
        # even when |mean| >> std (no catastrophic cancellation).
        inv_cols = 1.0 / float(content_ref.shape[-1])
        pivot_ref[...] = jnp.sum(x0, axis=-1, keepdims=True) * inv_cols
        sum_ref[...] = jnp.zeros_like(sum_ref)
        sumsq_ref[...] = jnp.zeros_like(sumsq_ref)

    @pl.when(j < nsb)
    def _():
        xd = content_ref[...].astype(jnp.float32) - pivot_ref[...]
        sum_ref[...] += jnp.sum(xd, axis=-1, keepdims=True)
        sumsq_ref[...] += jnp.sum(xd * xd, axis=-1, keepdims=True)

    @pl.when(j == nsb)
    def _():
        d_mean = sum_ref[...] * (1.0 / n_content)
        c_var = jnp.maximum(sumsq_ref[...] * (1.0 / n_content) - d_mean * d_mean, 0.0)
        c_mean = pivot_ref[...] + d_mean

        s = style_ref[...].astype(jnp.float32)
        s_mean = jnp.sum(s, axis=-1, keepdims=True) * (1.0 / n_style)
        sc = s - s_mean
        s_var = jnp.sum(sc * sc, axis=-1, keepdims=True) * (1.0 / (n_style - 1.0))

        scale = jnp.sqrt(s_var) * lax.rsqrt(c_var + eps)
        scale_ref[...] = scale
        shift_ref[...] = s_mean - scale * c_mean

    @pl.when(j >= nsb)
    def _():
        x = content_ref[...].astype(jnp.float32)
        out_ref[...] = (scale_ref[...] * x + shift_ref[...]).astype(out_ref.dtype)


# ---------------------------------------------------------------------------
# Tiling / budgeting helpers
# ---------------------------------------------------------------------------

def _per_core_vmem_bytes():
    reported = None
    try:
        reported = int(pltpu.get_tpu_info().vmem_capacity_bytes)
    except Exception:
        reported = None
    kind = ""
    try:
        kind = jax.devices()[0].device_kind.lower()
    except Exception:
        pass
    if "v7" in kind:
        # v7x: 64 MiB per TensorCore; the reported value may be chip level.
        cap = 64 << 20
        if reported is not None:
            cap = min(cap, reported)
    elif reported is not None:
        cap = reported
    else:
        cap = 64 << 20  # conservative fallback
    return cap


def _clamp_vmem_limit(footprint_bytes, vmem_cap):
    limit = int(footprint_bytes * 1.5) + (4 << 20)
    return max(32 << 20, min(limit, int(vmem_cap * 0.9)))


def _pick_tile_rows_fast(padded_rows, row_bytes, budget, pack):
    tile = max(pack, min(padded_rows, budget // max(row_bytes, 1)))
    # Prefer >= 4 grid steps: after v7x megacore sharding each TensorCore
    # still has >= 2 steps, so input DMA / compute / writeback overlap.
    if padded_rows >= 4 * pack:
        tile = min(tile, padded_rows // 4)
    tile = max(pack, (tile // pack) * pack)
    while tile > pack and padded_rows % tile != 0:
        tile -= pack
    return tile


def _pick_tile_cols(hwc, hws, itemsize, budget, tile_rows):
    # Style row stays resident (assume 2 buffers) + its f32 working copy;
    # content/out blocks double-buffered + one f32 tile-sized temp.
    # TODO(synk): also tile the style reduction when tile_rows*Hs*Ws alone
    # exceeds the VMEM budget.
    fixed = tile_rows * hws * (2 * itemsize + 4)
    per_col = tile_rows * (4 * itemsize + 4)
    avail = max(budget - fixed, 0)
    cols = max(128, min(hwc, (avail // per_col) // 128 * 128))
    while cols > 128 and hwc % cols != 0:
        cols -= 128
    return cols


# ---------------------------------------------------------------------------
# Wrapper
# ---------------------------------------------------------------------------

def adaptive_instance_norm_2d(content, style, eps=1e-5, tile_rows=None,
                              spatial_tile=None):
    """content: (B, C, Hc, Wc), style: (B, C, Hs, Ws) -> (B, C, Hc, Wc)."""
    b, c, hc, wc = content.shape
    bs, cs, hs, ws = style.shape
    assert bs == b and cs == c, "style must match content in batch/channels"
    assert jnp.issubdtype(content.dtype, jnp.floating), "floating dtypes only"

    n_rows = b * c
    hwc = hc * wc
    hws = hs * ws
    assert hws > 1, "style spatial size must be > 1 for an unbiased std"

    itemsize = jnp.dtype(content.dtype).itemsize
    pack = max(8, 32 // itemsize)          # sublane pack: 8 f32 / 16 bf16 / 32 i8
    padded_rows = ((n_rows + pack - 1) // pack) * pack

    content_2d = content.reshape(n_rows, hwc)
    style_2d = style.reshape(n_rows, hws)
    if padded_rows != n_rows:
        content_2d = jnp.pad(content_2d, ((0, padded_rows - n_rows), (0, 0)))
        style_2d = jnp.pad(style_2d, ((0, padded_rows - n_rows), (0, 0)))

    vmem_cap = _per_core_vmem_bytes()
    budget = int(vmem_cap * 0.70)

    # Fast-path per-row footprint: double-buffered content-in / style-in / out
    # blocks plus one f32 tile-sized live temporary (centered content).
    fast_row_bytes = 2 * (2 * hwc + hws) * itemsize + hwc * 4
    use_tiled = (spatial_tile is not None) or (
        pack * fast_row_bytes > budget and hwc % 128 == 0 and hwc > 128)

    if not use_tiled:
        # ------------------------------ fast path -----------------------------
        if tile_rows is None:
            tile_rows = _pick_tile_rows_fast(padded_rows, fast_row_bytes,
                                             budget, pack)
        assert padded_rows % tile_rows == 0

        io_bytes = 2 * tile_rows * (2 * hwc + hws) * itemsize
        tmp_bytes = tile_rows * hwc * 4
        vmem_limit = _clamp_vmem_limit(io_bytes + tmp_bytes, vmem_cap)

        kernel = functools.partial(
            _adain_row_kernel, eps=float(eps),
            n_content=float(hwc), n_style=float(hws))

        cost = pl.CostEstimate(
            flops=int(7 * padded_rows * hwc + 5 * padded_rows * hws),
            transcendentals=int(2 * padded_rows),
            bytes_accessed=int(padded_rows * (2 * hwc + hws) * itemsize))

        out_2d = pl.pallas_call(
            kernel,
            out_shape=jax.ShapeDtypeStruct((padded_rows, hwc), content.dtype),
            grid=(padded_rows // tile_rows,),
            in_specs=[
                pl.BlockSpec((tile_rows, hwc), lambda i: (i, 0)),
                pl.BlockSpec((tile_rows, hws), lambda i: (i, 0)),
            ],
            out_specs=pl.BlockSpec((tile_rows, hwc), lambda i: (i, 0)),
            compiler_params=pltpu.CompilerParams(
                # TODO(synk): switch to pltpu.CORE_PARALLEL if xprof shows the
                # "parallel" axis not sharding across v7x's two TensorCores.
                dimension_semantics=("parallel",),
                vmem_limit_bytes=vmem_limit,
            ),
            cost_estimate=cost,
        )(content_2d, style_2d)
    else:
        # -------------------------- large-H*W tiled path ----------------------
        assert hwc % 128 == 0, "spatial-tiled path needs Hc*Wc % 128 == 0"
        if tile_rows is None:
            tile_rows = pack  # TODO(synk): also grow rows when budget allows.
        assert padded_rows % tile_rows == 0

        if spatial_tile is None:
            spatial_tile = _pick_tile_cols(hwc, hws, itemsize, budget, tile_rows)
        assert spatial_tile % 128 == 0 and hwc % spatial_tile == 0
        nsb = hwc // spatial_tile

        io_bytes = (2 * tile_rows * spatial_tile * itemsize * 2
                    + 2 * tile_rows * hws * itemsize)
        tmp_bytes = tile_rows * (spatial_tile + hws) * 4
        vmem_limit = _clamp_vmem_limit(io_bytes + tmp_bytes, vmem_cap)

        kernel = functools.partial(
            _adain_tiled_kernel, eps=float(eps),
            n_content=float(hwc), n_style=float(hws), nsb=nsb)

        cost = pl.CostEstimate(
            flops=int(9 * padded_rows * hwc + 5 * padded_rows * hws),
            transcendentals=int(2 * padded_rows),
            bytes_accessed=int(padded_rows * (3 * hwc + hws) * itemsize))

        out_2d = pl.pallas_call(
            kernel,
            out_shape=jax.ShapeDtypeStruct((padded_rows, hwc), content.dtype),
            grid=(padded_rows // tile_rows, 2 * nsb),
            in_specs=[
                pl.BlockSpec((tile_rows, spatial_tile),
                             lambda i, j: (i, jnp.where(j < nsb, j, j - nsb))),
                pl.BlockSpec((tile_rows, hws), lambda i, j: (i, 0)),
            ],
            out_specs=pl.BlockSpec((tile_rows, spatial_tile),
                                   lambda i, j: (i, jnp.maximum(j - nsb, 0))),
            scratch_shapes=[pltpu.VMEM((tile_rows, 1), jnp.float32)] * 5,
            compiler_params=pltpu.CompilerParams(
                dimension_semantics=("parallel", "arbitrary"),
                vmem_limit_bytes=vmem_limit,
            ),
            cost_estimate=cost,
        )(content_2d, style_2d)

    out_2d = out_2d[:n_rows]
    return out_2d.reshape(b, c, hc, wc)


# ---------------------------------------------------------------------------
# Pure-JAX reference
# ---------------------------------------------------------------------------

def _reference(content, style, eps=1e-5):
    b, c, hc, wc = content.shape
    _, _, hs, ws = style.shape
    x = content.reshape(b, c, hc * wc).astype(jnp.float32)
    s = style.reshape(b, c, hs * ws).astype(jnp.float32)
    c_mean = x.mean(-1, keepdims=True)
    c_var = ((x - c_mean) ** 2).mean(-1, keepdims=True)
    s_mean = s.mean(-1, keepdims=True)
    s_std = jnp.sqrt(((s - s_mean) ** 2).sum(-1, keepdims=True) / (hs * ws - 1))
    out = s_std * (x - c_mean) / jnp.sqrt(c_var + eps) + s_mean
    return out.reshape(b, c, hc, wc).astype(content.dtype)


if __name__ == "__main__":
    eps = 1e-5
    key = jax.random.PRNGKey(0)
    k1, k2, k3, k4 = jax.random.split(key, 4)

    # Deterministic buffers from __init__ (unused by the training=True forward).
    num_features = 4
    running_mean = jnp.zeros((num_features,), jnp.float32)
    running_var = jnp.ones((num_features,), jnp.float32)
    # TODO(synk): the running-stat momentum EMA is a training-time side effect
    # with no impact on the forward output; not materialized here.

    # Case 1: fast path (whole spatial row resident per block).
    B, C, H, W = 2, 4, 16, 16
    content = jax.random.normal(k1, (B, C, H, W), jnp.float32) * 1.5 + 3.0
    style = jax.random.normal(k2, (B, C, H, W), jnp.float32) * 2.0 + 0.5
    out = jax.block_until_ready(adaptive_instance_norm_2d(content, style, eps=eps))
    ref = _reference(content, style, eps=eps)
    assert out.shape == content.shape
    assert jnp.allclose(out, ref, atol=1e-4, rtol=1e-4), "fast path mismatch"

    # Case 2: force the large-H*W spatial-tiled ("arbitrary" axis) path on the
    # same small input to validate the reduction/apply two-sweep structure.
    out_t = jax.block_until_ready(
        adaptive_instance_norm_2d(content, style, eps=eps, spatial_tile=128))
    assert jnp.allclose(out_t, ref, atol=1e-4, rtol=1e-4), "tiled path mismatch"

    # Case 3: B*C not a multiple of the sublane pack -> row-padding path.
    B2, C2 = 2, 5
    content2 = jax.random.normal(k3, (B2, C2, H, W), jnp.float32)
    style2 = jax.random.normal(k4, (B2, C2, H, W), jnp.float32) * 0.7 - 1.2
    out2 = jax.block_until_ready(adaptive_instance_norm_2d(content2, style2, eps=eps))
    ref2 = _reference(content2, style2, eps=eps)
    assert jnp.allclose(out2, ref2, atol=1e-4, rtol=1e-4), "padded-rows mismatch"

    print("KERNEL_OK")
</pallas_src>

<mosaic_0001>
module attributes {stable_mosaic.version = 11 : i64} {
  func.func @_adain_row_kernel(%arg0: i32, %arg1: memref<8x256xf32, #tpu.memory_space<vmem>>, %arg2: memref<8x256xf32, #tpu.memory_space<vmem>>, %arg3: memref<8x256xf32, #tpu.memory_space<vmem>>) attributes {dimension_semantics = [#tpu.dimension_semantics<parallel>], iteration_bounds = array<i64: 1>, scalar_prefetch = 0 : i64, scratch_operands = 0 : i64, tpu.core_type = #tpu.core_type<tc>, window_params = [{transform_indices = @transform_0, window_bounds = array<i64: 8, 256>}, {transform_indices = @transform_1, window_bounds = array<i64: 8, 256>}, {transform_indices = @transform_2, window_bounds = array<i64: 8, 256>}]} {
    %c0 = arith.constant 0 : index
    %c0_0 = arith.constant 0 : index
    %0 = vector.load %arg1[%c0, %c0_0] : memref<8x256xf32, #tpu.memory_space<vmem>>, vector<8x256xf32>
    %c0_1 = arith.constant 0 : index
    %c0_2 = arith.constant 0 : index
    %1 = vector.load %arg2[%c0_1, %c0_2] : memref<8x256xf32, #tpu.memory_space<vmem>>, vector<8x256xf32>
    %cst = arith.constant dense<0.000000e+00> : vector<8xf32>
    %2 = vector.multi_reduction <add>, %0, %cst [1] : vector<8x256xf32> to vector<8xf32>
    %3 = vector.shape_cast %2 : vector<8xf32> to vector<8x1xf32>
    %cst_3 = arith.constant 3.906250e-03 : f32
    %4 = vector.broadcast %cst_3 : f32 to vector<8x1xf32>
    %5 = arith.mulf %3, %4 : vector<8x1xf32>
    %6 = vector.broadcast %5 : vector<8x1xf32> to vector<8x256xf32>
    %7 = arith.subf %0, %6 : vector<8x256xf32>
    %8 = arith.mulf %7, %7 : vector<8x256xf32>
    %cst_4 = arith.constant dense<0.000000e+00> : vector<8xf32>
    %9 = vector.multi_reduction <add>, %8, %cst_4 [1] : vector<8x256xf32> to vector<8xf32>
    %10 = vector.shape_cast %9 : vector<8xf32> to vector<8x1xf32>
    %cst_5 = arith.constant 3.906250e-03 : f32
    %11 = vector.broadcast %cst_5 : f32 to vector<8x1xf32>
    %12 = arith.mulf %10, %11 : vector<8x1xf32>
    %cst_6 = arith.constant dense<0.000000e+00> : vector<8xf32>
    %13 = vector.multi_reduction <add>, %1, %cst_6 [1] : vector<8x256xf32> to vector<8xf32>
    %14 = vector.shape_cast %13 : vector<8xf32> to vector<8x1xf32>
    %cst_7 = arith.constant 3.906250e-03 : f32
    %15 = vector.broadcast %cst_7 : f32 to vector<8x1xf32>
    %16 = arith.mulf %14, %15 : vector<8x1xf32>
    %17 = vector.broadcast %16 : vector<8x1xf32> to vector<8x256xf32>
    %18 = arith.subf %1, %17 : vector<8x256xf32>
    %19 = arith.mulf %18, %18 : vector<8x256xf32>
    %cst_8 = arith.constant dense<0.000000e+00> : vector<8xf32>
    %20 = vector.multi_reduction <add>, %19, %cst_8 [1] : vector<8x256xf32> to vector<8xf32>
    %21 = vector.shape_cast %20 : vector<8xf32> to vector<8x1xf32>
    %cst_9 = arith.constant 0.00392156886 : f32
    %22 = vector.broadcast %cst_9 : f32 to vector<8x1xf32>
    %23 = arith.mulf %21, %22 : vector<8x1xf32>
    %24 = math.sqrt %23 : vector<8x1xf32>
    %cst_10 = arith.constant 9.99999974E-6 : f32
    %25 = vector.broadcast %cst_10 : f32 to vector<8x1xf32>
    %26 = arith.addf %12, %25 : vector<8x1xf32>
    %27 = math.rsqrt %26 : vector<8x1xf32>
    %28 = arith.mulf %24, %27 : vector<8x1xf32>
    %29 = vector.broadcast %28 : vector<8x1xf32> to vector<8x256xf32>
    %30 = arith.mulf %29, %7 : vector<8x256xf32>
    %31 = vector.broadcast %16 : vector<8x1xf32> to vector<8x256xf32>
    %32 = arith.addf %30, %31 : vector<8x256xf32>
    %c0_11 = arith.constant 0 : index
    %c0_12 = arith.constant 0 : index
    %33 = vector.load %arg3[%c0_11, %c0_12] : memref<8x256xf32, #tpu.memory_space<vmem>>, vector<8x256xf32>
    tpu.vector_store %arg3[%c0_11, %c0_12], %32 {strides = array<i32>} : memref<8x256xf32, #tpu.memory_space<vmem>>, vector<8x256xf32>,
    return
  }
  func.func @transform_0(%arg0: i32) -> (i32, i32) {
    %c0_i32 = arith.constant 0 : i32
    %c0_i32_0 = arith.constant 0 : i32
    return %arg0, %c0_i32 : i32, i32
  }
  func.func @transform_1(%arg0: i32) -> (i32, i32) {
    %c0_i32 = arith.constant 0 : i32
    %c0_i32_0 = arith.constant 0 : i32
    return %arg0, %c0_i32 : i32, i32
  }
  func.func @transform_2(%arg0: i32) -> (i32, i32) {
    %c0_i32 = arith.constant 0 : i32
    %c0_i32_0 = arith.constant 0 : i32
    return %arg0, %c0_i32 : i32, i32
  }
}

</mosaic_0001>

<llo_original>
// kernel: tpu_custom_call.1
$region0: #{tpu_custom_call.1}
  #allocation0 [shape = 'u32[]', space=smem, size = 0x4, offset = 0x4, fixed_abs, tag = 'smem constant byte address 0x4 - core index']
  #allocation1 [shape = 'u32[144,128]{1,0:T(1,128)}', space=vmem, size = 0x12000, scoped, tag = 'internal scratch']
  %s0 = inlined_call_operand.hbm [shape: f32[8,256], index: 0, kind: input, shape index: {}]
  %s1 = inlined_call_operand.hbm [shape: f32[8,256], index: 1, kind: input, shape index: {}]
  %s2 = inlined_call_operand.hbm [shape: f32[8,256], index: 2, kind: output, shape index: {}]
  %s3 = sld [smem:[#allocation0]]
  $region26: #{tpu_custom_call.1} parent=0
    _
  %s5 = ssub.s32 1, %s3
  %s6 = scalar_select 0, %s5, %s3
  $region1: #{tpu_custom_call.1} parent=0
    #allocation2 [shape = 'u8[8192]{0}', space=vmem, size = 0x2000, scoped, tag = 'input window, operand 0, single buffered']
    #allocation3 [shape = 's32[1]{0}', space=sflag, size = 0x4, scoped, tag = 'scoped memory for tpu_custom_call.1']
    #allocation4 [shape = 's32[1]{0}', space=sflag, size = 0x4, scoped, tag = 'scoped memory for tpu_custom_call.1']
    #allocation5 [shape = 'u8[8192]{0}', space=vmem, size = 0x2000, scoped, tag = 'input window, operand 1, single buffered']
    #allocation6 [shape = 's32[1]{0}', space=sflag, size = 0x4, scoped, tag = 'scoped memory for tpu_custom_call.1']
    #allocation7 [shape = 'u8[8192]{0}', space=vmem, size = 0x2000, scoped, tag = 'output window, operand 0, single buffered']
    %7 = vsyncpa [#allocation3], 0
    %8 = vsyncpa [#allocation6], 0
    %9 = vsyncpa [#allocation4], 0
    // Predicated region
    $region2: #{tpu_custom_call.1} parent=1 // pred_check
      _
    $region3: #{tpu_custom_call.1} parent=1 // pred_check_branch
      %11 = sbr.rel (0) target = $region5
    $region4: #{tpu_custom_call.1} parent=1 // pred_region
      %s13 = ssub.s32 256, 256
      %14 = vsyncadd [#allocation3], %s13
      %s16 = sshll.u32 [#allocation2], 4
      %s17 = int_to_ptr.vmem [resolvable:$true] %s16
      %19 = dma.hbm_to_vmem [thread:$0]  %s0, 256, %s17, [#allocation3]
    $region5: #{tpu_custom_call.1} parent=1 // pred_fallthru
      _
    // Predicated region
    $region6: #{tpu_custom_call.1} parent=1 // pred_check
      _
    $region7: #{tpu_custom_call.1} parent=1 // pred_check_branch
      %21 = sbr.rel (0) target = $region9
    $region8: #{tpu_custom_call.1} parent=1 // pred_region
      %s23 = ssub.s32 256, 256
      %24 = vsyncadd [#allocation6], %s23
      %s26 = sshll.u32 [#allocation5], 4
      %s27 = int_to_ptr.vmem [resolvable:$true] %s26
      %29 = dma.hbm_to_vmem [thread:$0]  %s1, 256, %s27, [#allocation6]
    $region9: #{tpu_custom_call.1} parent=1 // pred_fallthru
      _
    // Predicated region
    $region10: #{tpu_custom_call.1} parent=1 // pred_check
      _
    $region11: #{tpu_custom_call.1} parent=1 // pred_check_branch
      %31 = sbr.rel (0) target = $region13
    $region12: #{tpu_custom_call.1} parent=1 // pred_region
      %32 = dma.done [#allocation3], 256
    $region13: #{tpu_custom_call.1} parent=1 // pred_fallthru
      _
    // Predicated region
    $region14: #{tpu_custom_call.1} parent=1 // pred_check
      _
    $region15: #{tpu_custom_call.1} parent=1 // pred_check_branch
      %34 = sbr.rel (0) target = $region17
    $region16: #{tpu_custom_call.1} parent=1 // pred_region
      %35 = dma.done [#allocation6], 256
    $region17: #{tpu_custom_call.1} parent=1 // pred_fallthru
      _
    %v36 = vld [vmem:[#allocation2] sm:$0xff]
    %v37 = vld [vmem:[#allocation2 + $0x8] sm:$0xff]
    %v38 = vld [vmem:[#allocation5] sm:$0xff]
    %v39 = vld [vmem:[#allocation5 + $0x8] sm:$0xff]
    %v40 = vadd.f32 %v36, %v37
    %41 = vadd.xlane.f32.xlu0 %v40
    %v42 = vpop.xlane.xlu0 %41
    %v43 = vmul.f32 %v42, 0.00390625
    %v44 = vsub.f32 %v36, %v43
    %v45 = vsub.f32 %v37, %v43
    %v46 = vmul.f32 %v44, %v44
    %v47 = vmul.f32 %v45, %v45
    %v48 = vadd.f32 %v46, %v47
    %49 = vadd.xlane.f32.xlu0 %v48
    %v50 = vpop.xlane.xlu0 %49
    %v51 = vmul.f32 %v50, 0.00390625
    %v52 = vadd.f32 %v38, %v39
    %53 = vadd.xlane.f32.xlu0 %v52
    %v54 = vpop.xlane.xlu0 %53
    %v55 = vmul.f32 %v54, 0.00390625
    %v56 = vsub.f32 %v38, %v55
    %v57 = vsub.f32 %v39, %v55
    %v58 = vmul.f32 %v56, %v56
    %v59 = vmul.f32 %v57, %v57
    %v60 = vadd.f32 %v58, %v59
    %61 = vadd.xlane.f32.xlu0 %v60
    %v62 = vpop.xlane.xlu0 %61
    %v63 = vmul.f32 %v62, 0.003921569
    %v64 = vrsqrt.pop %v63
    %v65 = vmul.f32 %v63, %v64
    %vm66 = vcmp.eq.f32.partialorder %v63, inf
    %v67 = vsel %vm66, %v63, %v65
    %vm68 = vcmp.eq.f32.partialorder %v63, 0.0
    %v69 = vand.u32 %v63, 2147483648
    %v70 = vsel %vm68, %v69, %v67
    %v71 = vadd.f32 %v51, 1e-05
    %v72 = vrsqrt.pop %v71
    %v73 = vmul.f32 %v70, %v72
    %v74 = vmul.f32 %v73, %v44
    %v75 = vmul.f32 %v73, %v45
    %v76 = vadd.f32 %v74, %v55
    %v77 = vadd.f32 %v75, %v55
    %78 = vst [vmem:[#allocation7] sm:$0xff] %v76
    %79 = vst [vmem:[#allocation7 + $0x8] sm:$0xff] %v77
    // Predicated region
    $region18: #{tpu_custom_call.1} parent=1 // pred_check
      _
    $region19: #{tpu_custom_call.1} parent=1 // pred_check_branch
      %81 = sbr.rel (0) target = $region21
    $region20: #{tpu_custom_call.1} parent=1 // pred_region
      %s83 = ssub.s32 256, 256
      %84 = vsyncadd [#allocation4], %s83
      %s86 = sshll.u32 [#allocation7], 4
      %s87 = int_to_ptr.vmem [resolvable:$true] %s86
      %89 = dma.vmem_to_hbm [thread:$0]  %s87, 256, %s2, [#allocation4]
    $region21: #{tpu_custom_call.1} parent=1 // pred_fallthru
      _
    // Predicated region
    $region22: #{tpu_custom_call.1} parent=1 // pred_check
      _
    $region23: #{tpu_custom_call.1} parent=1 // pred_check_branch
      %91 = sbr.rel (0) target = $region25
    $region24: #{tpu_custom_call.1} parent=1 // pred_region
      %92 = dma.done [#allocation4], 256
    $region25: #{tpu_custom_call.1} parent=1 // pred_fallthru
      _
    %93 = vsyncpa [#allocation3], 1
    %94 = vsyncpa [#allocation6], 1
    %95 = vsyncpa [#allocation4], 1

</llo_original>
